<compile_context>
chip_gen: v5e
topology: v5e:2x2
jax: 0.10.0
libtpu: 0.0.40
codegen_flags: <defaults>
</compile_context>

<pallas_src>
import functools
import math

import jax
import jax.numpy as jnp
from jax.experimental import pallas as pl
from jax.experimental.pallas import tpu as pltpu


# --------------------------- fused Pallas kernel ------------------------------

def _fused_kernel(x4t_ref, x_ref, w0_ref, m_ref, wmlp_ref, wend_ref, wlin_ref,
                  rows_ref, hbias_ref, out_ref, *,
                  num_rel, gdepth, alpha, batch, c_out, d_model, ccn, scn, eps):
    """Entire GraphBlockRGCN forward, VMEM-resident, batch-rows layout.

    Layouts (rows, cols):
      h0 / aggs : ((b, v),        (c, t))    (16, 32)
      h stacked : ((r, b, v),     (c, t))    (48, 32)   relations batched in rows
      z / g     : ((b, v),        (sc, t))   (16, 128)  lane-dense GELU
      ec        : ((s),           (b, v))    (8, 16)
      y         : ((s),           (b, d))    (8, 64)
      out       : per-batch (n, d) slabs     (8, 32)
    """
    f32 = jnp.float32
    dot = lambda a, b: jnp.dot(a, b, preferred_element_type=f32)
    # A @ B^T : contract last dims of both operands (same pattern as flash attention).
    ndt = lambda a, b: jax.lax.dot_general(a, b, (((1,), (1,)), ((), ())),
                                           preferred_element_type=f32)
    bv = batch * c_out

    rows = rows_ref[...]                       # (4, width) bias/affine bundle
    b_start = rows[0:1, :ccn]                  # (1, CC*N)
    b_mlp   = rows[1:2, :scn]                  # (1, SC*N)
    gamma   = rows[2:3, :d_model]              # (1, D)
    beta    = rows[3:4, :d_model]              # (1, D)

    # ---- start_conv: Conv2d(1->CC, kernel=(K,1)) as one matmul on im2col'd input ----
    h0 = dot(x4t_ref[...], w0_ref[...]) + b_start              # (B*V, CC*N)

    # ---- MixPropRGCN: relations stacked along rows; ONE matmul per hop ----
    h0_big = jnp.concatenate([h0] * num_rel, axis=0)           # (R*B*V, CC*N)
    m = m_ref[...]                                             # block-diag kron(I_B, a_r)
    h = h0_big
    aggs = [float(num_rel) * h0]                               # hop-0 summed over relations
    for _ in range(gdepth):
        h = alpha * h0_big + (1.0 - alpha) * dot(m, h)
        # TODO(synk): nn.Dropout here is identity in eval mode (reproduced as such).
        aggs.append(sum(h[r * bv:(r + 1) * bv, :] for r in range(num_rel)))

    # ---- 1x1-conv mlp + exact-erf GELU, lane-dense (B*V, SC*N) ----
    z = b_mlp
    for i in range(gdepth + 1):
        z = z + dot(aggs[i], wmlp_ref[i])                      # (B*V, SC*N)
    g = 0.5 * z * (1.0 + jax.lax.erf(z * (1.0 / math.sqrt(2.0))))

    # ---- end_conv: contract (skip_ch, time) lanes of both operands (NT dot) ----
    ec = ndt(wend_ref[...], g)                                 # (S, B*V)

    # ---- head Linear for all batches in one block-diag matmul; b_end/b_lin pre-folded --
    y = dot(ec, wlin_ref[...]) + hbias_ref[...]                # (S, B*D)

    # ---- residual + LayerNorm (centered variance), unrolled over batch ----
    for b in range(batch):
        r = x_ref[b] + y[:, b * d_model:(b + 1) * d_model]     # (N, D)
        mu = jnp.mean(r, axis=-1, keepdims=True)
        c = r - mu
        var = jnp.mean(c * c, axis=-1, keepdims=True)
        out_ref[b] = c * jax.lax.rsqrt(var + eps) * gamma + beta


# --------------------------- operand preparation --------------------------------

def _prepare_param_operands(params, *, c_out, d_model, conv_channel, skip_channel,
                            num_relations, gcn_depth, seq_len, batch):
    """Kernel operands that depend ONLY on params/config — cache across forwards."""
    V, CC, SC, G, R = c_out, conv_channel, skip_channel, gcn_depth, num_relations
    S = N = seq_len
    B, D = batch, d_model
    K = d_model - c_out + 1
    f32 = jnp.float32
    eyeN = jnp.eye(N, dtype=f32)
    eyeB = jnp.eye(B, dtype=f32)

    adj = jax.nn.softmax(params["adj"].astype(f32), axis=-1)            # (R, V, V)
    sub = adj + jnp.eye(V, dtype=f32)[None]
    a_norm = sub / jnp.sum(sub, axis=-1, keepdims=True)                 # row-normalized

    # propagation: rows ordered (relation, batch, node); one left-matmul per hop
    m_big = jax.scipy.linalg.block_diag(
        *[jnp.kron(eyeB, a_norm[r]) for r in range(R)])                 # (R*B*V, R*B*V)

    # start_conv lifted so columns carry (c, t): kron(w_start^T, I_N)
    w0 = jnp.kron(params["w_start"].astype(f32).T, eyeN)                # (K*N, CC*N)

    # mlp 1x1-conv lifted so columns carry (skip_ch, t), one slab per hop
    w_mlp = params["w_mlp"].astype(f32)
    wmlp_hops = jnp.stack(
        [jnp.kron(w_mlp[:, h * CC:(h + 1) * CC].T, eyeN) for h in range(G + 1)],
        axis=0)                                                         # (G+1, CC*N, SC*N)

    wend = params["w_end"].astype(f32).reshape(S, SC * N)               # (S, SC*N)

    wlin_t = params["w_lin"].astype(f32).T                              # (V, D)
    wlin_bd = jax.scipy.linalg.block_diag(*([wlin_t] * B))              # (B*V, B*D)

    # fold b_end and b_lin into one additive slab on the head output:
    #   y[b,s,d] += b_end[s] * sum_v w_lin[d,v] + b_lin[d]
    wlin_rowsum = jnp.sum(params["w_lin"].astype(f32), axis=1)          # (D,)
    hbias_one = (params["b_end"].astype(f32)[:, None] * wlin_rowsum[None, :]
                 + params["b_lin"].astype(f32)[None, :])                # (S, D)
    hbias = jnp.tile(hbias_one, (1, B))                                 # (S, B*D)

    width = max(CC * N, SC * N, D)
    rows = jnp.zeros((4, width), f32)
    rows = rows.at[0, :CC * N].set(jnp.repeat(params["b_start"].astype(f32), N))
    rows = rows.at[1, :SC * N].set(jnp.repeat(params["b_mlp"].astype(f32), N))
    rows = rows.at[2, :D].set(params["gamma"].astype(f32))
    rows = rows.at[3, :D].set(params["beta"].astype(f32))

    return dict(w0=w0, m=m_big, wmlp=wmlp_hops, wend=wend, wlin=wlin_bd,
                rows=rows, hbias=hbias)


# --------------------------- wrapper ---------------------------------------------

def graph_block_rgcn_forward(x, params, *, c_out, d_model, conv_channel, skip_channel,
                             num_relations, gcn_depth, propalpha, seq_len):
    B, N, D = x.shape
    assert N == seq_len and D == d_model
    V, CC, SC, G, R = c_out, conv_channel, skip_channel, gcn_depth, num_relations
    K = d_model - c_out + 1
    f32 = jnp.float32

    # NOTE: depends only on params/config -> cache it across forwards at inference time.
    ops = _prepare_param_operands(
        params, c_out=c_out, d_model=d_model, conv_channel=conv_channel,
        skip_channel=skip_channel, num_relations=num_relations, gcn_depth=gcn_depth,
        seq_len=seq_len, batch=B)

    # im2col in batch-rows layout: rows (b, v), cols (k, t).
    # TODO(synk): at production d_model/seq_len fold this K-fold replication into the
    # kernel (accumulate the start_conv over k from a VMEM-resident x slab with pl.ds)
    # instead of materializing (B*V, K*N) in HBM.
    win = jnp.stack([x[:, :, k:k + V] for k in range(K)], axis=0)        # (K, B, N, V)
    x4t = win.transpose(1, 3, 0, 2).reshape(B * V, K * N).astype(f32)    # (B*V, K*N)

    vmem = pl.BlockSpec(memory_space=pltpu.MemorySpace.VMEM)
    kern = functools.partial(
        _fused_kernel, num_rel=R, gdepth=G, alpha=propalpha, batch=B,
        c_out=V, d_model=D, ccn=CC * N, scn=SC * N, eps=1e-5)
    # TODO(synk): at production sizes add a ("parallel",) grid axis (v7x second TC),
    # bf16 matmul operands, and an explicit vmem_limit_bytes; single ungridded call with
    # f32 operands is the right shape at this toy size.
    out = pl.pallas_call(
        kern,
        out_shape=jax.ShapeDtypeStruct((B, N, D), f32),
        in_specs=[vmem] * 9,
        out_specs=vmem,
    )(x4t, x.astype(f32), ops["w0"], ops["m"], ops["wmlp"], ops["wend"],
      ops["wlin"], ops["rows"], ops["hbias"])
    return out


# --------------------------- pure-JAX reference --------------------------------

def reference_forward(x, p, *, c_out, d_model, conv_channel, skip_channel,
                      num_relations, gcn_depth, propalpha, seq_len):
    hi = jax.lax.Precision.HIGHEST
    B, N, D = x.shape
    V, CC, G, R = c_out, conv_channel, gcn_depth, num_relations
    K = d_model - c_out + 1
    adj = jax.nn.softmax(p["adj"], axis=-1)
    xt = jnp.transpose(x, (0, 2, 1))                                # (B, D, N)
    h0 = jnp.stack(
        [jnp.einsum("ck,bkn->bcn", p["w_start"], xt[:, v:v + K, :], precision=hi)
         for v in range(V)], axis=2) + p["b_start"][None, :, None, None]   # (B,CC,V,N)
    ho_list = []
    for r in range(R):
        sub = adj[r] + jnp.eye(V, dtype=x.dtype)
        a = sub / jnp.sum(sub, axis=1)[:, None]
        h = h0
        outs = [h0]
        for _ in range(G):
            prop = jnp.einsum("bcwl,vw->bcvl", h, a, precision=hi)
            h = propalpha * h0 + (1.0 - propalpha) * prop
            outs.append(h)
        ho_list.append(jnp.concatenate(outs, axis=1))
    agg = sum(ho_list)                                              # 'sum' aggregation
    z = (jnp.einsum("oc,bcvl->bovl", p["w_mlp"], agg, precision=hi)
         + p["b_mlp"][None, :, None, None])
    g = 0.5 * z * (1.0 + jax.lax.erf(z / math.sqrt(2.0)))
    ec = (jnp.einsum("sct,bcvt->bsv", p["w_end"], g, precision=hi)
          + p["b_end"][None, :, None])
    y = jnp.einsum("bsv,dv->bsd", ec, p["w_lin"], precision=hi) + p["b_lin"][None, None, :]
    r_ = x + y
    mu = jnp.mean(r_, axis=-1, keepdims=True)
    var = jnp.mean((r_ - mu) ** 2, axis=-1, keepdims=True)
    return (r_ - mu) / jnp.sqrt(var + 1e-5) * p["gamma"] + p["beta"]


# --------------------------- params ---------------------------------------------

def init_params(key, *, c_out, d_model, conv_channel, skip_channel,
                num_relations, gcn_depth, seq_len):
    K = d_model - c_out + 1
    Cg = (gcn_depth + 1) * conv_channel
    ks = jax.random.split(key, 9)
    f32 = jnp.float32
    return {
        "adj":     jnp.abs(jax.random.normal(ks[0], (num_relations, c_out, c_out), f32)),
        "w_start": 0.2 * jax.random.normal(ks[1], (conv_channel, K), f32),
        "b_start": 0.1 * jax.random.normal(ks[2], (conv_channel,), f32),
        "w_mlp":   0.2 * jax.random.normal(ks[3], (skip_channel, Cg), f32),
        "b_mlp":   0.1 * jax.random.normal(ks[4], (skip_channel,), f32),
        "w_end":   0.1 * jax.random.normal(ks[5], (seq_len, skip_channel, seq_len), f32),
        "b_end":   0.1 * jax.random.normal(ks[6], (seq_len,), f32),
        "w_lin":   0.2 * jax.random.normal(ks[7], (d_model, c_out), f32),
        "b_lin":   0.1 * jax.random.normal(ks[8], (d_model,), f32),
        "gamma":   jnp.ones((d_model,), f32),
        "beta":    jnp.zeros((d_model,), f32),
    }


# --------------------------- main -------------------------------------------------

if __name__ == "__main__":
    cfg = dict(c_out=8, d_model=32, conv_channel=4, skip_channel=16,
               num_relations=3, gcn_depth=2, propalpha=0.05, seq_len=8)
    B = 2  # B > 1 so .squeeze() in the torch module only drops the trailing dim

    key = jax.random.PRNGKey(0)
    kx, kp = jax.random.split(key)
    x = jax.random.normal(kx, (B, cfg["seq_len"], cfg["d_model"]), jnp.float32)
    params = init_params(
        kp, c_out=cfg["c_out"], d_model=cfg["d_model"], conv_channel=cfg["conv_channel"],
        skip_channel=cfg["skip_channel"], num_relations=cfg["num_relations"],
        gcn_depth=cfg["gcn_depth"], seq_len=cfg["seq_len"])

    fwd = jax.jit(functools.partial(graph_block_rgcn_forward, **cfg))
    out = jax.block_until_ready(fwd(x, params))
    assert out.shape == (B, cfg["seq_len"], cfg["d_model"])

    ref = reference_forward(x, params, **cfg)
    if not bool(jnp.allclose(out, ref, rtol=2e-2, atol=2e-2)):
        raise AssertionError("Pallas output does not match JAX reference")
    print("KERNEL_OK")
</pallas_src>

<mosaic_0001>
module attributes {stable_mosaic.version = 11 : i64} {
  func.func @_fused_kernel(%arg0: memref<16x200xf32, #tpu.memory_space<vmem>>, %arg1: memref<2x8x32xf32, #tpu.memory_space<vmem>>, %arg2: memref<200x32xf32, #tpu.memory_space<vmem>>, %arg3: memref<48x48xf32, #tpu.memory_space<vmem>>, %arg4: memref<3x32x128xf32, #tpu.memory_space<vmem>>, %arg5: memref<8x128xf32, #tpu.memory_space<vmem>>, %arg6: memref<16x64xf32, #tpu.memory_space<vmem>>, %arg7: memref<4x128xf32, #tpu.memory_space<vmem>>, %arg8: memref<8x64xf32, #tpu.memory_space<vmem>>, %arg9: memref<2x8x32xf32, #tpu.memory_space<vmem>>) attributes {dimension_semantics = [], scalar_prefetch = 0 : i64, scratch_operands = 0 : i64, tpu.core_type = #tpu.core_type<tc>} {
    %c0 = arith.constant 0 : index
    %c0_0 = arith.constant 0 : index
    %0 = vector.load %arg7[%c0, %c0_0] : memref<4x128xf32, #tpu.memory_space<vmem>>, vector<4x128xf32>
    %1 = vector.extract_strided_slice %0 {offsets = [0, 0], sizes = [1, 32], strides = [1, 1]} : vector<4x128xf32> to vector<1x32xf32>
    %2 = vector.extract_strided_slice %0 {offsets = [1, 0], sizes = [1, 128], strides = [1, 1]} : vector<4x128xf32> to vector<1x128xf32>
    %3 = vector.extract_strided_slice %0 {offsets = [2, 0], sizes = [1, 32], strides = [1, 1]} : vector<4x128xf32> to vector<1x32xf32>
    %4 = vector.extract_strided_slice %0 {offsets = [3, 0], sizes = [1, 32], strides = [1, 1]} : vector<4x128xf32> to vector<1x32xf32>
    %c0_1 = arith.constant 0 : index
    %c0_2 = arith.constant 0 : index
    %5 = vector.load %arg0[%c0_1, %c0_2] : memref<16x200xf32, #tpu.memory_space<vmem>>, vector<16x200xf32>
    %c0_3 = arith.constant 0 : index
    %c0_4 = arith.constant 0 : index
    %6 = vector.load %arg2[%c0_3, %c0_4] : memref<200x32xf32, #tpu.memory_space<vmem>>, vector<200x32xf32>
    %cst = arith.constant dense<0.000000e+00> : vector<16x32xf32>
    %7 = tpu.matmul %5, %6, %cst {dimension_numbers = #tpu.dot_dimension_numbers<[1], [0], [0], [1], [0, 0, 1, 1], [], []>} : vector<16x200xf32>, vector<200x32xf32>, vector<16x32xf32> -> vector<16x32xf32>
    %8 = vector.broadcast %1 : vector<1x32xf32> to vector<16x32xf32>
    %9 = arith.addf %7, %8 : vector<16x32xf32>
    %10 = tpu.concatenate %9, %9, %9 in 0 : vector<16x32xf32>, vector<16x32xf32>, vector<16x32xf32> -> vector<48x32xf32>
    %c0_5 = arith.constant 0 : index
    %c0_6 = arith.constant 0 : index
    %11 = vector.load %arg3[%c0_5, %c0_6] : memref<48x48xf32, #tpu.memory_space<vmem>>, vector<48x48xf32>
    %cst_7 = arith.constant 3.000000e+00 : f32
    %12 = vector.broadcast %cst_7 : f32 to vector<16x32xf32>
    %13 = arith.mulf %12, %9 : vector<16x32xf32>
    %cst_8 = arith.constant 5.000000e-02 : f32
    %14 = vector.broadcast %cst_8 : f32 to vector<48x32xf32>
    %15 = arith.mulf %14, %10 : vector<48x32xf32>
    %cst_9 = arith.constant dense<0.000000e+00> : vector<48x32xf32>
    %16 = tpu.matmul %11, %10, %cst_9 {dimension_numbers = #tpu.dot_dimension_numbers<[1], [0], [0], [1], [0, 0, 1, 1], [], []>} : vector<48x48xf32>, vector<48x32xf32>, vector<48x32xf32> -> vector<48x32xf32>
    %cst_10 = arith.constant 0.949999988 : f32
    %17 = vector.broadcast %cst_10 : f32 to vector<48x32xf32>
    %18 = arith.mulf %17, %16 : vector<48x32xf32>
    %19 = arith.addf %15, %18 : vector<48x32xf32>
    %20 = vector.extract_strided_slice %19 {offsets = [0, 0], sizes = [16, 32], strides = [1, 1]} : vector<48x32xf32> to vector<16x32xf32>
    %cst_11 = arith.constant 0.000000e+00 : f32
    %21 = vector.broadcast %cst_11 : f32 to vector<16x32xf32>
    %22 = arith.addf %21, %20 : vector<16x32xf32>
    %23 = vector.extract_strided_slice %19 {offsets = [16, 0], sizes = [16, 32], strides = [1, 1]} : vector<48x32xf32> to vector<16x32xf32>
    %24 = arith.addf %22, %23 : vector<16x32xf32>
    %25 = vector.extract_strided_slice %19 {offsets = [32, 0], sizes = [16, 32], strides = [1, 1]} : vector<48x32xf32> to vector<16x32xf32>
    %26 = arith.addf %24, %25 : vector<16x32xf32>
    %cst_12 = arith.constant 5.000000e-02 : f32
    %27 = vector.broadcast %cst_12 : f32 to vector<48x32xf32>
    %28 = arith.mulf %27, %10 : vector<48x32xf32>
    %cst_13 = arith.constant dense<0.000000e+00> : vector<48x32xf32>
    %29 = tpu.matmul %11, %19, %cst_13 {dimension_numbers = #tpu.dot_dimension_numbers<[1], [0], [0], [1], [0, 0, 1, 1], [], []>} : vector<48x48xf32>, vector<48x32xf32>, vector<48x32xf32> -> vector<48x32xf32>
    %cst_14 = arith.constant 0.949999988 : f32
    %30 = vector.broadcast %cst_14 : f32 to vector<48x32xf32>
    %31 = arith.mulf %30, %29 : vector<48x32xf32>
    %32 = arith.addf %28, %31 : vector<48x32xf32>
    %33 = vector.extract_strided_slice %32 {offsets = [0, 0], sizes = [16, 32], strides = [1, 1]} : vector<48x32xf32> to vector<16x32xf32>
    %cst_15 = arith.constant 0.000000e+00 : f32
    %34 = vector.broadcast %cst_15 : f32 to vector<16x32xf32>
    %35 = arith.addf %34, %33 : vector<16x32xf32>
    %36 = vector.extract_strided_slice %32 {offsets = [16, 0], sizes = [16, 32], strides = [1, 1]} : vector<48x32xf32> to vector<16x32xf32>
    %37 = arith.addf %35, %36 : vector<16x32xf32>
    %38 = vector.extract_strided_slice %32 {offsets = [32, 0], sizes = [16, 32], strides = [1, 1]} : vector<48x32xf32> to vector<16x32xf32>
    %39 = arith.addf %37, %38 : vector<16x32xf32>
    %c0_16 = arith.constant 0 : index
    %c0_17 = arith.constant 0 : index
    %c0_18 = arith.constant 0 : index
    %40 = vector.load %arg4[%c0_16, %c0_17, %c0_18] : memref<3x32x128xf32, #tpu.memory_space<vmem>>, vector<1x32x128xf32>
    %41 = vector.shape_cast %40 : vector<1x32x128xf32> to vector<32x128xf32>
    %cst_19 = arith.constant dense<0.000000e+00> : vector<16x128xf32>
    %42 = tpu.matmul %13, %41, %cst_19 {dimension_numbers = #tpu.dot_dimension_numbers<[1], [0], [0], [1], [0, 0, 1, 1], [], []>} : vector<16x32xf32>, vector<32x128xf32>, vector<16x128xf32> -> vector<16x128xf32>
    %43 = vector.broadcast %2 : vector<1x128xf32> to vector<16x128xf32>
    %44 = arith.addf %43, %42 : vector<16x128xf32>
    %c1 = arith.constant 1 : index
    %c0_20 = arith.constant 0 : index
    %c0_21 = arith.constant 0 : index
    %45 = vector.load %arg4[%c1, %c0_20, %c0_21] : memref<3x32x128xf32, #tpu.memory_space<vmem>>, vector<1x32x128xf32>
    %46 = vector.shape_cast %45 : vector<1x32x128xf32> to vector<32x128xf32>
    %cst_22 = arith.constant dense<0.000000e+00> : vector<16x128xf32>
    %47 = tpu.matmul %26, %46, %cst_22 {dimension_numbers = #tpu.dot_dimension_numbers<[1], [0], [0], [1], [0, 0, 1, 1], [], []>} : vector<16x32xf32>, vector<32x128xf32>, vector<16x128xf32> -> vector<16x128xf32>
    %48 = arith.addf %44, %47 : vector<16x128xf32>
    %c2 = arith.constant 2 : index
    %c0_23 = arith.constant 0 : index
    %c0_24 = arith.constant 0 : index
    %49 = vector.load %arg4[%c2, %c0_23, %c0_24] : memref<3x32x128xf32, #tpu.memory_space<vmem>>, vector<1x32x128xf32>
    %50 = vector.shape_cast %49 : vector<1x32x128xf32> to vector<32x128xf32>
    %cst_25 = arith.constant dense<0.000000e+00> : vector<16x128xf32>
    %51 = tpu.matmul %39, %50, %cst_25 {dimension_numbers = #tpu.dot_dimension_numbers<[1], [0], [0], [1], [0, 0, 1, 1], [], []>} : vector<16x32xf32>, vector<32x128xf32>, vector<16x128xf32> -> vector<16x128xf32>
    %52 = arith.addf %48, %51 : vector<16x128xf32>
    %cst_26 = arith.constant 5.000000e-01 : f32
    %53 = vector.broadcast %cst_26 : f32 to vector<16x128xf32>
    %54 = arith.mulf %53, %52 : vector<16x128xf32>
    %cst_27 = arith.constant 0.707106769 : f32
    %55 = vector.broadcast %cst_27 : f32 to vector<16x128xf32>
    %56 = arith.mulf %52, %55 : vector<16x128xf32>
    %57 = math.erf %56 : vector<16x128xf32>
    %cst_28 = arith.constant 1.000000e+00 : f32
    %58 = vector.broadcast %cst_28 : f32 to vector<16x128xf32>
    %59 = arith.addf %58, %57 : vector<16x128xf32>
    %60 = arith.mulf %54, %59 : vector<16x128xf32>
    %c0_29 = arith.constant 0 : index
    %c0_30 = arith.constant 0 : index
    %61 = vector.load %arg5[%c0_29, %c0_30] : memref<8x128xf32, #tpu.memory_space<vmem>>, vector<8x128xf32>
    %cst_31 = arith.constant dense<0.000000e+00> : vector<8x16xf32>
    %62 = tpu.matmul %61, %60, %cst_31 {dimension_numbers = #tpu.dot_dimension_numbers<[1], [1], [0], [0], [0, 0, 1, 0], [], []>} : vector<8x128xf32>, vector<16x128xf32>, vector<8x16xf32> -> vector<8x16xf32>
    %c0_32 = arith.constant 0 : index
    %c0_33 = arith.constant 0 : index
    %63 = vector.load %arg6[%c0_32, %c0_33] : memref<16x64xf32, #tpu.memory_space<vmem>>, vector<16x64xf32>
    %cst_34 = arith.constant dense<0.000000e+00> : vector<8x64xf32>
    %64 = tpu.matmul %62, %63, %cst_34 {dimension_numbers = #tpu.dot_dimension_numbers<[1], [0], [0], [1], [0, 0, 1, 1], [], []>} : vector<8x16xf32>, vector<16x64xf32>, vector<8x64xf32> -> vector<8x64xf32>
    %c0_35 = arith.constant 0 : index
    %c0_36 = arith.constant 0 : index
    %65 = vector.load %arg8[%c0_35, %c0_36] : memref<8x64xf32, #tpu.memory_space<vmem>>, vector<8x64xf32>
    %66 = arith.addf %64, %65 : vector<8x64xf32>
    %c0_37 = arith.constant 0 : index
    %c0_38 = arith.constant 0 : index
    %c0_39 = arith.constant 0 : index
    %67 = vector.load %arg1[%c0_37, %c0_38, %c0_39] : memref<2x8x32xf32, #tpu.memory_space<vmem>>, vector<1x8x32xf32>
    %68 = vector.shape_cast %67 : vector<1x8x32xf32> to vector<8x32xf32>
    %69 = vector.extract_strided_slice %66 {offsets = [0, 0], sizes = [8, 32], strides = [1, 1]} : vector<8x64xf32> to vector<8x32xf32>
    %70 = arith.addf %68, %69 : vector<8x32xf32>
    %cst_40 = arith.constant dense<0.000000e+00> : vector<8xf32>
    %71 = vector.multi_reduction <add>, %70, %cst_40 [1] : vector<8x32xf32> to vector<8xf32>
    %72 = vector.shape_cast %71 : vector<8xf32> to vector<8x1xf32>
    %cst_41 = arith.constant 3.200000e+01 : f32
    %73 = vector.broadcast %cst_41 : f32 to vector<8x1xf32>
    %74 = arith.divf %72, %73 : vector<8x1xf32>
    %75 = vector.broadcast %74 : vector<8x1xf32> to vector<8x32xf32>
    %76 = arith.subf %70, %75 : vector<8x32xf32>
    %77 = arith.mulf %76, %76 : vector<8x32xf32>
    %cst_42 = arith.constant dense<0.000000e+00> : vector<8xf32>
    %78 = vector.multi_reduction <add>, %77, %cst_42 [1] : vector<8x32xf32> to vector<8xf32>
    %79 = vector.shape_cast %78 : vector<8xf32> to vector<8x1xf32>
    %cst_43 = arith.constant 3.200000e+01 : f32
    %80 = vector.broadcast %cst_43 : f32 to vector<8x1xf32>
    %81 = arith.divf %79, %80 : vector<8x1xf32>
    %cst_44 = arith.constant 9.99999974E-6 : f32
    %82 = vector.broadcast %cst_44 : f32 to vector<8x1xf32>
    %83 = arith.addf %81, %82 : vector<8x1xf32>
    %84 = math.rsqrt %83 : vector<8x1xf32>
    %85 = vector.broadcast %84 : vector<8x1xf32> to vector<8x32xf32>
    %86 = arith.mulf %76, %85 : vector<8x32xf32>
    %87 = vector.broadcast %3 : vector<1x32xf32> to vector<8x32xf32>
    %88 = arith.mulf %86, %87 : vector<8x32xf32>
    %89 = vector.broadcast %4 : vector<1x32xf32> to vector<8x32xf32>
    %90 = arith.addf %88, %89 : vector<8x32xf32>
    %c0_45 = arith.constant 0 : index
    %c0_46 = arith.constant 0 : index
    %c0_47 = arith.constant 0 : index
    %91 = vector.load %arg9[%c0_45, %c0_46, %c0_47] : memref<2x8x32xf32, #tpu.memory_space<vmem>>, vector<1x8x32xf32>
    %92 = vector.shape_cast %91 : vector<1x8x32xf32> to vector<8x32xf32>
    %93 = vector.shape_cast %90 : vector<8x32xf32> to vector<1x8x32xf32>
    tpu.vector_store %arg9[%c0_45, %c0_46, %c0_47], %93 {strides = array<i32>} : memref<2x8x32xf32, #tpu.memory_space<vmem>>, vector<1x8x32xf32>,
    %c1_48 = arith.constant 1 : index
    %c0_49 = arith.constant 0 : index
    %c0_50 = arith.constant 0 : index
    %94 = vector.load %arg1[%c1_48, %c0_49, %c0_50] : memref<2x8x32xf32, #tpu.memory_space<vmem>>, vector<1x8x32xf32>
    %95 = vector.shape_cast %94 : vector<1x8x32xf32> to vector<8x32xf32>
    %96 = vector.extract_strided_slice %66 {offsets = [0, 32], sizes = [8, 32], strides = [1, 1]} : vector<8x64xf32> to vector<8x32xf32>
    %97 = arith.addf %95, %96 : vector<8x32xf32>
    %cst_51 = arith.constant dense<0.000000e+00> : vector<8xf32>
    %98 = vector.multi_reduction <add>, %97, %cst_51 [1] : vector<8x32xf32> to vector<8xf32>
    %99 = vector.shape_cast %98 : vector<8xf32> to vector<8x1xf32>
    %cst_52 = arith.constant 3.200000e+01 : f32
    %100 = vector.broadcast %cst_52 : f32 to vector<8x1xf32>
    %101 = arith.divf %99, %100 : vector<8x1xf32>
    %102 = vector.broadcast %101 : vector<8x1xf32> to vector<8x32xf32>
    %103 = arith.subf %97, %102 : vector<8x32xf32>
    %104 = arith.mulf %103, %103 : vector<8x32xf32>
    %cst_53 = arith.constant dense<0.000000e+00> : vector<8xf32>
    %105 = vector.multi_reduction <add>, %104, %cst_53 [1] : vector<8x32xf32> to vector<8xf32>
    %106 = vector.shape_cast %105 : vector<8xf32> to vector<8x1xf32>
    %cst_54 = arith.constant 3.200000e+01 : f32
    %107 = vector.broadcast %cst_54 : f32 to vector<8x1xf32>
    %108 = arith.divf %106, %107 : vector<8x1xf32>
    %cst_55 = arith.constant 9.99999974E-6 : f32
    %109 = vector.broadcast %cst_55 : f32 to vector<8x1xf32>
    %110 = arith.addf %108, %109 : vector<8x1xf32>
    %111 = math.rsqrt %110 : vector<8x1xf32>
    %112 = vector.broadcast %111 : vector<8x1xf32> to vector<8x32xf32>
    %113 = arith.mulf %103, %112 : vector<8x32xf32>
    %114 = vector.broadcast %3 : vector<1x32xf32> to vector<8x32xf32>
    %115 = arith.mulf %113, %114 : vector<8x32xf32>
    %116 = vector.broadcast %4 : vector<1x32xf32> to vector<8x32xf32>
    %117 = arith.addf %115, %116 : vector<8x32xf32>
    %c1_56 = arith.constant 1 : index
    %c0_57 = arith.constant 0 : index
    %c0_58 = arith.constant 0 : index
    %118 = vector.load %arg9[%c1_56, %c0_57, %c0_58] : memref<2x8x32xf32, #tpu.memory_space<vmem>>, vector<1x8x32xf32>
    %119 = vector.shape_cast %118 : vector<1x8x32xf32> to vector<8x32xf32>
    %120 = vector.shape_cast %117 : vector<8x32xf32> to vector<1x8x32xf32>
    tpu.vector_store %arg9[%c1_56, %c0_57, %c0_58], %120 {strides = array<i32>} : memref<2x8x32xf32, #tpu.memory_space<vmem>>, vector<1x8x32xf32>,
    return
  }
}

</mosaic_0001>

<llo_original>
// kernel: tile.9
$region0: #{tile.9}
  %s0 = inlined_call_operand.vmem [shape: f32[8,2,32], index: 0, kind: input, shape index: {}]
  %s1 = inlined_call_operand.vmem [shape: f32[8,64], index: 1, kind: output, shape index: {}]
  $region1: #{tile.9} parent=0
    #allocation0 [shape = 'u8[32768]{0}', space=vmem, size = 0x8000, scoped, tag = 'scoped mem for input reshape']
    %s3 = ssub.s32 4, 1
    %s4 = scalar_lea.vmem %s0, 14
    %v5 = vld [vmem:[%s4] sm:%s3]
    %s6 = scalar_lea.vmem [#allocation0], 56
    %7 = vst [vmem:[%s6] sm:%s3] %v5
    %s8 = scalar_lea.vmem %s0, 12
    %v9 = vld [vmem:[%s8] sm:%s3]
    %s10 = scalar_lea.vmem [#allocation0], 48
    %11 = vst [vmem:[%s10] sm:%s3] %v9
    %s12 = scalar_lea.vmem %s0, 10
    %v13 = vld [vmem:[%s12] sm:%s3]
    %s14 = scalar_lea.vmem [#allocation0], 40
    %15 = vst [vmem:[%s14] sm:%s3] %v13
    %s16 = scalar_lea.vmem %s0, 8
    %v17 = vld [vmem:[%s16] sm:%s3]
    %s18 = scalar_lea.vmem [#allocation0], 32
    %19 = vst [vmem:[%s18] sm:%s3] %v17
    %s20 = scalar_lea.vmem %s0, 6
    %v21 = vld [vmem:[%s20] sm:%s3]
    %s22 = scalar_lea.vmem [#allocation0], 24
    %23 = vst [vmem:[%s22] sm:%s3] %v21
    %s24 = scalar_lea.vmem %s0, 4
    %v25 = vld [vmem:[%s24] sm:%s3]
    %s26 = scalar_lea.vmem [#allocation0], 16
    %27 = vst [vmem:[%s26] sm:%s3] %v25
    %s28 = scalar_lea.vmem %s0, 2
    %v29 = vld [vmem:[%s28] sm:%s3]
    %s30 = scalar_lea.vmem [#allocation0], 8
    %31 = vst [vmem:[%s30] sm:%s3] %v29
    %v32 = vld [vmem:[%s0] sm:%s3]
    %33 = vst [vmem:[#allocation0] sm:%s3] %v32
    %v34 = vld [vmem:[#allocation0] ss:$8 sm:$0xf]
    %v35 = vld [vmem:[#allocation0] ss:$8 sm:$0xf0]
    %vm36 = vcmask 1047556
    %v37 = vsel %vm36, %v35, %v34
    %vm38 = vcmask 261120
    %39 = vst.msk [vmem:[%s1] sm:$0xff] %vm38, %v37
    %s40 = scalar_lea.vmem [#allocation0], 1
    %v41 = vld [vmem:[%s40] ss:$8 sm:$0xf]
    %s42 = scalar_lea.vmem [#allocation0], 1
    %v43 = vld [vmem:[%s42] ss:$8 sm:$0xf0]
    %vm44 = vcmask 1047556
    %v45 = vsel %vm44, %v43, %v41
    %46 = vrot.lane.b32.xlu0 %v45, 32
    %v47 = vpop.permute.xlu0 %46
    %vm48 = vcmask 523520
    %49 = vst.msk [vmem:[%s1] sm:$0xff] %vm48, %v47

// kernel: graph_block_rgcn_forward.1
$region0: #{graph_block_rgcn_forward.1}
  #allocation0 [shape = 'u32[]', space=smem, size = 0x4, offset = 0x4, fixed_abs, tag = 'smem constant byte address 0x4 - core index']
  #allocation1 [shape = 'u32[72,128]{1,0:T(1,128)}', space=vmem, size = 0x9000, scoped, tag = 'internal scratch']
  %s0 = inlined_call_operand.vmem [shape: f32[16,200], index: 0, kind: input, shape index: {}]
  %s1 = inlined_call_operand.vmem [shape: f32[2,8,32], index: 1, kind: input, shape index: {}]
  %s2 = inlined_call_operand.vmem [shape: f32[200,32], index: 2, kind: input, shape index: {}]
  %s3 = inlined_call_operand.vmem [shape: f32[48,48], index: 3, kind: input, shape index: {}]
  %s4 = inlined_call_operand.vmem [shape: f32[3,32,128], index: 4, kind: input, shape index: {}]
  %s5 = inlined_call_operand.vmem [shape: f32[8,128], index: 5, kind: input, shape index: {}]
  %s6 = inlined_call_operand.vmem [shape: f32[16,64], index: 6, kind: input, shape index: {}]
  %s7 = inlined_call_operand.vmem [shape: f32[4,128], index: 7, kind: input, shape index: {}]
  %s8 = inlined_call_operand.vmem [shape: f32[8,64], index: 8, kind: input, shape index: {}]
  %s9 = inlined_call_operand.hbm [shape: f32[2,8,32], index: 9, kind: output, shape index: {}]
  %s10 = sld [smem:[#allocation0]]
  $region46: #{graph_block_rgcn_forward.1} parent=0
    _
  %s12 = ssub.s32 1, %s10
  %s13 = scalar_select 0, %s12, %s10
  $region1: #{graph_block_rgcn_forward.1} parent=0
    #allocation2 [shape = 'u8[8192]{0}', space=vmem, size = 0x2000, scoped, tag = 'output window, operand 0, single buffered']
    #allocation3 [shape = 's32[1]{0}', space=sflag, size = 0x4, scoped, tag = 'scoped memory for graph_block_rgcn_forward.1']
    %14 = vsyncpa [#allocation3], 0
    // Predicated region
    $region2: #{graph_block_rgcn_forward.1} parent=1 // pred_check
      _
    $region3: #{graph_block_rgcn_forward.1} parent=1 // pred_check_branch
      %16 = sbr.rel (0) target = $region5
    $region4: #{graph_block_rgcn_forward.1} parent=1 // pred_region
      _
    $region5: #{graph_block_rgcn_forward.1} parent=1 // pred_fallthru
      _
    // Predicated region
    $region6: #{graph_block_rgcn_forward.1} parent=1 // pred_check
      _
    $region7: #{graph_block_rgcn_forward.1} parent=1 // pred_check_branch
      %18 = sbr.rel (0) target = $region9
    $region8: #{graph_block_rgcn_forward.1} parent=1 // pred_region
      _
    $region9: #{graph_block_rgcn_forward.1} parent=1 // pred_fallthru
      _
    // Predicated region
    $region10: #{graph_block_rgcn_forward.1} parent=1 // pred_check
      _
    $region11: #{graph_block_rgcn_forward.1} parent=1 // pred_check_branch
      %20 = sbr.rel (0) target = $region13
    $region12: #{graph_block_rgcn_forward.1} parent=1 // pred_region
      _
    $region13: #{graph_block_rgcn_forward.1} parent=1 // pred_fallthru
      _
    // Predicated region
    $region14: #{graph_block_rgcn_forward.1} parent=1 // pred_check
      _
    $region15: #{graph_block_rgcn_forward.1} parent=1 // pred_check_branch
      %22 = sbr.rel (0) target = $region17
    $region16: #{graph_block_rgcn_forward.1} parent=1 // pred_region
      _
    $region17: #{graph_block_rgcn_forward.1} parent=1 // pred_fallthru
      _
    // Predicated region
    $region18: #{graph_block_rgcn_forward.1} parent=1 // pred_check
      _
    $region19: #{graph_block_rgcn_forward.1} parent=1 // pred_check_branch
      %24 = sbr.rel (0) target = $region21
    $region20: #{graph_block_rgcn_forward.1} parent=1 // pred_region
      _
    $region21: #{graph_block_rgcn_forward.1} parent=1 // pred_fallthru
      _
    // Predicated region
    $region22: #{graph_block_rgcn_forward.1} parent=1 // pred_check
      _
    $region23: #{graph_block_rgcn_forward.1} parent=1 // pred_check_branch
      %26 = sbr.rel (0) target = $region25
    $region24: #{graph_block_rgcn_forward.1} parent=1 // pred_region
      _
    $region25: #{graph_block_rgcn_forward.1} parent=1 // pred_fallthru
      _
    // Predicated region
    $region26: #{graph_block_rgcn_forward.1} parent=1 // pred_check
      _
    $region27: #{graph_block_rgcn_forward.1} parent=1 // pred_check_branch
      %28 = sbr.rel (0) target = $region29
    $region28: #{graph_block_rgcn_forward.1} parent=1 // pred_region
      _
    $region29: #{graph_block_rgcn_forward.1} parent=1 // pred_fallthru
      _
    // Predicated region
    $region30: #{graph_block_rgcn_forward.1} parent=1 // pred_check
      _
    $region31: #{graph_block_rgcn_forward.1} parent=1 // pred_check_branch
      %30 = sbr.rel (0) target = $region33
    $region32: #{graph_block_rgcn_forward.1} parent=1 // pred_region
      _
    $region33: #{graph_block_rgcn_forward.1} parent=1 // pred_fallthru
      _
    // Predicated region
    $region34: #{graph_block_rgcn_forward.1} parent=1 // pred_check
      _
    $region35: #{graph_block_rgcn_forward.1} parent=1 // pred_check_branch
      %32 = sbr.rel (0) target = $region37
    $region36: #{graph_block_rgcn_forward.1} parent=1 // pred_region
      _
    $region37: #{graph_block_rgcn_forward.1} parent=1 // pred_fallthru
      _
    %v33 = vld [vmem:[%s7] sm:$0xf]
    %v34 = vld [vmem:[%s0] sm:$0xff]
    %v35 = vld [vmem:[%s0 + $0x8] sm:$0xff]
    %v36 = vld [vmem:[%s0 + $0x10] sm:$0xff]
    %v37 = vld [vmem:[%s0 + $0x18] sm:$0xff]
    %v38 = vld [vmem:[%s2] sm:$0xff]
    %v39 = vld [vmem:[%s2 + $0x8] sm:$0xff]
    %v40 = vld [vmem:[%s2 + $0x10] sm:$0xff]
    %v41 = vld [vmem:[%s2 + $0x18] sm:$0xff]
    %v42 = vld [vmem:[%s2 + $0x20] sm:$0xff]
    %v43 = vld [vmem:[%s2 + $0x28] sm:$0xff]
    %v44 = vld [vmem:[%s2 + $0x30] sm:$0xff]
    %v45 = vld [vmem:[%s2 + $0x38] sm:$0xff]
    %v46 = vld [vmem:[%s2 + $0x40] sm:$0xff]
    %v47 = vld [vmem:[%s2 + $0x48] sm:$0xff]
    %v48 = vld [vmem:[%s2 + $0x50] sm:$0xff]
    %v49 = vld [vmem:[%s2 + $0x58] sm:$0xff]
    %v50 = vld [vmem:[%s2 + $0x60] sm:$0xff]
    %v51 = vld [vmem:[%s2 + $0x68] sm:$0xff]
    %v52 = vld [vmem:[%s2 + $0x70] sm:$0xff]
    %v53 = vld [vmem:[%s2 + $0x78] sm:$0xff]
    %v54 = vld [vmem:[%s2 + $0x80] sm:$0xff]
    %v55 = vld [vmem:[%s2 + $0x88] sm:$0xff]
    %v56 = vld [vmem:[%s2 + $0x90] sm:$0xff]
    %v57 = vld [vmem:[%s2 + $0x98] sm:$0xff]
    %v58 = vld [vmem:[%s2 + $0xa0] sm:$0xff]
    %v59 = vld [vmem:[%s2 + $0xa8] sm:$0xff]
    %v60 = vld [vmem:[%s2 + $0xb0] sm:$0xff]
    %v61 = vld [vmem:[%s2 + $0xb8] sm:$0xff]
    %v62 = vld [vmem:[%s2 + $0xc0] sm:$0xff]
    %v63 = vperm.slane %v33, 0
    %vm64 = vcmask 588800
    %v66 = vsel %vm64, %v35, 0
    %v69 = vsel %vm64, %v37, 0
    %71 = vmatpush.msra.mxu0 %v53
    %72 = vmatpush.msra.mxu0 %v52
    %73 = vmatpush.msra.mxu0 %v51
    %74 = vmatpush.msra.mxu0 %v50
    %75 = vmatpush.msra.mxu0 %v49
    %76 = vmatpush.msra.mxu0 %v48
    %77 = vmatpush.msra.mxu0 %v47
    %78 = vmatpush.msra.mxu0 %v46
    %79 = vmatpush.msra.mxu0 %v45
    %80 = vmatpush.msra.mxu0 %v44
    %81 = vmatpush.msra.mxu0 %v43
    %82 = vmatpush.msra.mxu0 %v42
    %83 = vmatpush.msra.mxu0 %v41
    %84 = vmatpush.msra.mxu0 %v40
    %85 = vmatpush.msra.mxu0 %v39
    %86 = vmatpush.msra.mxu0 %v38
    %87 = vmatmul.f32.gmra.mxu0 %v34
    %v88 = vpop.f32.mrf.mxu0
    %v89 = vadd.f32 %v63, %v88
    %90 = vmatmul.f32.gmra.mxu0 %v36
    %v91 = vpop.f32.mrf.mxu0
    %v92 = vadd.f32 %v63, %v91
    %93 = vdwg.mxu0
    %94 = vmatpush.msra.mxu0 0.0
    %95 = vmatpush.msra.mxu0 0.0
    %96 = vmatpush.msra.mxu0 0.0
    %97 = vmatpush.msra.mxu0 0.0
    %98 = vmatpush.msra.mxu0 0.0
    %99 = vmatpush.msra.mxu0 0.0
    %100 = vmatpush.msra.mxu0 0.0
    %101 = vmatpush.msra.mxu0 %v62
    %102 = vmatpush.msra.mxu0 %v61
    %103 = vmatpush.msra.mxu0 %v60
    %104 = vmatpush.msra.mxu0 %v59
    %105 = vmatpush.msra.mxu0 %v58
    %106 = vmatpush.msra.mxu0 %v57
    %107 = vmatpush.msra.mxu0 %v56
    %108 = vmatpush.msra.mxu0 %v55
    %109 = vmatpush.msra.mxu0 %v54
    %110 = vmatmul.f32.gmra.mxu0 %v66
    %v111 = vpop.f32.mrf.mxu0
    %v112 = vadd.f32 %v89, %v111
    %113 = vmatmul.f32.gmra.mxu0 %v69
    %v114 = vpop.f32.mrf.mxu0
    %v115 = vadd.f32 %v92, %v114
    %116 = vdwg.mxu0
    %v117 = vld [vmem:[%s3] sm:$0xff]
    %v118 = vld [vmem:[%s3 + $0x8] sm:$0xff]
    %v119 = vld [vmem:[%s3 + $0x10] sm:$0xff]
    %v120 = vld [vmem:[%s3 + $0x18] sm:$0xff]
    %v121 = vld [vmem:[%s3 + $0x20] sm:$0xff]
    %v122 = vld [vmem:[%s3 + $0x28] sm:$0xff]
    %v123 = vmul.f32 %v112, 3.0
    %v124 = vmul.f32 %v115, 3.0
    %v125 = vmul.f32 %v112, 0.05
    %v126 = vmul.f32 %v115, 0.05
    %vm127 = vcmask 392192
    %v129 = vsel %vm127, %v117, 0
    %v132 = vsel %vm127, %v118, 0
    %v135 = vsel %vm127, %v119, 0
    %v138 = vsel %vm127, %v120, 0
    %v141 = vsel %vm127, %v121, 0
    %v144 = vsel %vm127, %v122, 0
    %146 = vmatpush.msra.mxu0 0.0
    %147 = vmatpush.msra.mxu0 0.0
    %148 = vmatpush.msra.mxu0 0.0
    %149 = vmatpush.msra.mxu0 0.0
    %150 = vmatpush.msra.mxu0 0.0
    %151 = vmatpush.msra.mxu0 0.0
    %152 = vmatpush.msra.mxu0 0.0
    %153 = vmatpush.msra.mxu0 0.0
    %154 = vmatpush.msra.mxu0 0.0
    %155 = vmatpush.msra.mxu0 0.0
    %156 = vmatpush.msra.mxu0 %v115
    %157 = vmatpush.msra.mxu0 %v112
    %158 = vmatpush.msra.mxu0 %v115
    %159 = vmatpush.msra.mxu0 %v112
    %160 = vmatpush.msra.mxu0 %v115
    %161 = vmatpush.msra.mxu0 %v112
    %162 = vmatmul.f32.gmra.mxu0 %v129
    %v163 = vpop.f32.mrf.mxu0
    %v164 = vadd.f32 0.0, %v163
    %165 = vmatmul.f32.gmra.mxu0 %v132
    %v166 = vpop.f32.mrf.mxu0
    %v167 = vadd.f32 0.0, %v166
    %168 = vmatmul.f32.gmra.mxu0 %v135
    %v169 = vpop.f32.mrf.mxu0
    %v170 = vadd.f32 0.0, %v169
    %171 = vmatmul.f32.gmra.mxu0 %v138
    %v172 = vpop.f32.mrf.mxu0
    %v173 = vadd.f32 0.0, %v172
    %174 = vmatmul.f32.gmra.mxu0 %v141
    %v175 = vpop.f32.mrf.mxu0
    %v176 = vadd.f32 0.0, %v175
    %177 = vmatmul.f32.gmra.mxu0 %v144
    %v178 = vpop.f32.mrf.mxu0
    %v179 = vadd.f32 0.0, %v178
    %180 = vdwg.mxu0
    %v181 = vmul.f32 %v164, 0.95
    %v182 = vmul.f32 %v167, 0.95
    %v183 = vmul.f32 %v170, 0.95
    %v184 = vmul.f32 %v173, 0.95
    %v185 = vmul.f32 %v176, 0.95
    %v186 = vmul.f32 %v179, 0.95
    %v187 = vadd.f32 %v125, %v181
    %v188 = vadd.f32 %v126, %v182
    %v189 = vadd.f32 %v125, %v183
    %v190 = vadd.f32 %v126, %v184
    %v191 = vadd.f32 %v125, %v185
    %v192 = vadd.f32 %v126, %v186
    %v193 = vadd.f32 %v187, 0.0
    %v194 = vadd.f32 %v188, 0.0
    %v195 = vadd.f32 %v193, %v189
    %v196 = vadd.f32 %v194, %v190
    %v197 = vadd.f32 %v195, %v191
    %v198 = vadd.f32 %v196, %v192
    %199 = vmatpush.msra.mxu0 0.0
    %200 = vmatpush.msra.mxu0 0.0
    %201 = vmatpush.msra.mxu0 0.0
    %202 = vmatpush.msra.mxu0 0.0
    %203 = vmatpush.msra.mxu0 0.0
    %204 = vmatpush.msra.mxu0 0.0
    %205 = vmatpush.msra.mxu0 0.0
    %206 = vmatpush.msra.mxu0 0.0
    %207 = vmatpush.msra.mxu0 0.0
    %208 = vmatpush.msra.mxu0 0.0
    %209 = vmatpush.msra.mxu0 %v192
    %210 = vmatpush.msra.mxu0 %v191
    %211 = vmatpush.msra.mxu0 %v190
    %212 = vmatpush.msra.mxu0 %v189
    %213 = vmatpush.msra.mxu0 %v188
    %214 = vmatpush.msra.mxu0 %v187
    %215 = vmatmul.f32.gmra.mxu0 %v129
    %v216 = vpop.f32.mrf.mxu0
    %v217 = vadd.f32 0.0, %v216
    %218 = vmatmul.f32.gmra.mxu0 %v132
    %v219 = vpop.f32.mrf.mxu0
    %v220 = vadd.f32 0.0, %v219
    %221 = vmatmul.f32.gmra.mxu0 %v135
    %v222 = vpop.f32.mrf.mxu0
    %v223 = vadd.f32 0.0, %v222
    %224 = vmatmul.f32.gmra.mxu0 %v138
    %v225 = vpop.f32.mrf.mxu0
    %v226 = vadd.f32 0.0, %v225
    %227 = vmatmul.f32.gmra.mxu0 %v141
    %v228 = vpop.f32.mrf.mxu0
    %v229 = vadd.f32 0.0, %v228
    %230 = vmatmul.f32.gmra.mxu0 %v144
    %v231 = vpop.f32.mrf.mxu0
    %v232 = vadd.f32 0.0, %v231
    %233 = vdwg.mxu0
    %v234 = vmul.f32 %v217, 0.95
    %v235 = vmul.f32 %v220, 0.95
    %v236 = vmul.f32 %v223, 0.95
    %v237 = vmul.f32 %v226, 0.95
    %v238 = vmul.f32 %v229, 0.95
    %v239 = vmul.f32 %v232, 0.95
    %v240 = vadd.f32 %v125, %v234
    %v241 = vadd.f32 %v126, %v235
    %v242 = vadd.f32 %v125, %v236
    %v243 = vadd.f32 %v126, %v237
    %v244 = vadd.f32 %v125, %v238
    %v245 = vadd.f32 %v126, %v239
    %v246 = vadd.f32 %v240, 0.0
    %v247 = vadd.f32 %v241, 0.0
    %v248 = vadd.f32 %v246, %v242
    %v249 = vadd.f32 %v247, %v243
    %v250 = vadd.f32 %v248, %v244
    %v251 = vadd.f32 %v249, %v245
    %v252 = vld [vmem:[%s4] sm:$0xff]
    %v253 = vld [vmem:[%s4 + $0x8] sm:$0xff]
    %v254 = vld [vmem:[%s4 + $0x10] sm:$0xff]
    %v255 = vld [vmem:[%s4 + $0x18] sm:$0xff]
    %vm256 = vcmask 261120
    %v258 = vsel %vm256, %v123, 0
    %v261 = vsel %vm256, %v124, 0
    %263 = vmatpush.msra.mxu0 0.0
    %264 = vmatpush.msra.mxu0 0.0
    %265 = vmatpush.msra.mxu0 0.0
    %266 = vmatpush.msra.mxu0 0.0
    %267 = vmatpush.msra.mxu0 0.0
    %268 = vmatpush.msra.mxu0 0.0
    %269 = vmatpush.msra.mxu0 0.0
    %270 = vmatpush.msra.mxu0 0.0
    %271 = vmatpush.msra.mxu0 0.0
    %272 = vmatpush.msra.mxu0 0.0
    %273 = vmatpush.msra.mxu0 0.0
    %274 = vmatpush.msra.mxu0 0.0
    %275 = vmatpush.msra.mxu0 %v255
    %276 = vmatpush.msra.mxu0 %v254
    %277 = vmatpush.msra.mxu0 %v253
    %278 = vmatpush.msra.mxu0 %v252
    %279 = vmatmul.f32.gmra.mxu0 %v258
    %v280 = vpop.f32.mrf.mxu0
    %v281 = vadd.f32 0.0, %v280
    %282 = vmatmul.f32.gmra.mxu0 %v261
    %v283 = vpop.f32.mrf.mxu0
    %v284 = vadd.f32 0.0, %v283
    %285 = vdwg.mxu0
    %v286 = vperm.slane %v33, 1
    %v287 = vadd.f32 %v286, %v281
    %v288 = vadd.f32 %v286, %v284
    %s289 = scalar_lea.vmem %s4, 32
    %v290 = vld [vmem:[%s289] sm:$0xff]
    %v291 = vld [vmem:[%s289 + $0x8] sm:$0xff]
    %v292 = vld [vmem:[%s289 + $0x10] sm:$0xff]
    %v293 = vld [vmem:[%s289 + $0x18] sm:$0xff]
    %v295 = vsel %vm256, %v197, 0
    %v298 = vsel %vm256, %v198, 0
    %300 = vmatpush.msra.mxu0 0.0
    %301 = vmatpush.msra.mxu0 0.0
    %302 = vmatpush.msra.mxu0 0.0
    %303 = vmatpush.msra.mxu0 0.0
    %304 = vmatpush.msra.mxu0 0.0
    %305 = vmatpush.msra.mxu0 0.0
    %306 = vmatpush.msra.mxu0 0.0
    %307 = vmatpush.msra.mxu0 0.0
    %308 = vmatpush.msra.mxu0 0.0
    %309 = vmatpush.msra.mxu0 0.0
    %310 = vmatpush.msra.mxu0 0.0
    %311 = vmatpush.msra.mxu0 0.0
    %312 = vmatpush.msra.mxu0 %v293
    %313 = vmatpush.msra.mxu0 %v292
    %314 = vmatpush.msra.mxu0 %v291
    %315 = vmatpush.msra.mxu0 %v290
    %316 = vmatmul.f32.gmra.mxu0 %v295
    %v317 = vpop.f32.mrf.mxu0
    %v318 = vadd.f32 0.0, %v317
    %319 = vmatmul.f32.gmra.mxu0 %v298
    %v320 = vpop.f32.mrf.mxu0
    %v321 = vadd.f32 0.0, %v320
    %322 = vdwg.mxu0
    %v323 = vadd.f32 %v287, %v318
    %v324 = vadd.f32 %v288, %v321
    %s325 = scalar_lea.vmem %s4, 64
    %v326 = vld [vmem:[%s325] sm:$0xff]
    %v327 = vld [vmem:[%s325 + $0x8] sm:$0xff]
    %v328 = vld [vmem:[%s325 + $0x10] sm:$0xff]
    %v329 = vld [vmem:[%s325 + $0x18] sm:$0xff]
    %v331 = vsel %vm256, %v250, 0
    %v334 = vsel %vm256, %v251, 0
    %336 = vmatpush.msra.mxu0 0.0
    %337 = vmatpush.msra.mxu0 0.0
    %338 = vmatpush.msra.mxu0 0.0
    %339 = vmatpush.msra.mxu0 0.0
    %340 = vmatpush.msra.mxu0 0.0
    %341 = vmatpush.msra.mxu0 0.0
    %342 = vmatpush.msra.mxu0 0.0
    %343 = vmatpush.msra.mxu0 0.0
    %344 = vmatpush.msra.mxu0 0.0
    %345 = vmatpush.msra.mxu0 0.0
    %346 = vmatpush.msra.mxu0 0.0
    %347 = vmatpush.msra.mxu0 0.0
    %348 = vmatpush.msra.mxu0 %v329
    %349 = vmatpush.msra.mxu0 %v328
    %350 = vmatpush.msra.mxu0 %v327
    %351 = vmatpush.msra.mxu0 %v326
    %352 = vmatmul.f32.gmra.mxu0 %v331
    %v353 = vpop.f32.mrf.mxu0
    %v354 = vadd.f32 0.0, %v353
    %355 = vmatmul.f32.gmra.mxu0 %v334
    %v356 = vpop.f32.mrf.mxu0
    %v357 = vadd.f32 0.0, %v356
    %358 = vdwg.mxu0
    %v359 = vadd.f32 %v323, %v354
    %v360 = vadd.f32 %v324, %v357
    %v361 = vmul.f32 %v359, 0.5
    %v362 = vmul.f32 %v360, 0.5
    %v363 = vmul.f32 %v359, 0.70710677
    %v364 = vmul.f32 %v360, 0.70710677
    %v365 = vmul.f32 %v363, %v363
    %v366 = vmin.f32 16.0, %v365
    %v367 = vmul.f32 %v366, 2.1237322e-06
    %v368 = vadd.f32 %v367, 0.00028619796
    %v369 = vmul.f32 %v366, %v368
    %v370 = vadd.f32 %v369, 0.0036580483
    %v371 = vmul.f32 %v366, %v370
    %v372 = vadd.f32 %v371, 0.05243302
    %v373 = vmul.f32 %v366, %v372
    %v374 = vadd.f32 %v373, 0.18741608
    %v375 = vmul.f32 %v366, %v374
    %v376 = vadd.f32 %v375, 1.1283791
    %v377 = vmul.f32 %v363, %v376
    %v378 = vmul.f32 %v366, 3.8918573e-05
    %v379 = vadd.f32 %v378, 0.001143296
    %v380 = vmul.f32 %v366, %v379
    %v381 = vadd.f32 %v380, 0.014752088
    %v382 = vmul.f32 %v366, %v381
    %v383 = vadd.f32 %v382, 0.112945676
    %v384 = vmul.f32 %v366, %v383
    %v385 = vadd.f32 %v384, 0.4994258
    %v386 = vmul.f32 %v366, %v385
    %v387 = vadd.f32 %v386, 1.0
    %v388 = vrcp.pop %v387
    %v389 = vmul.f32 %v387, %v388
    %v390 = vsub.f32 1.0, %v389
    %v391 = vmul.f32 %v388, %v390
    %v392 = vadd.f32 %v388, %v391
    %vm393 = vweird.f32 %v387
    %vm394 = vweird.f32 %v388
    %vm395 = vmor %vm393, %vm394
    %v396 = vsel %vm395, %v388, %v392
    %v397 = vand.u32 2147483647, %v387
    %vm398 = vcmp.eq.f32.partialorder %v397, 8.507059e+37
    %v399 = vand.u32 %v387, 2147483648
    %v400 = vor.u32 1.1754944e-38, %v399
    %v401 = vsel %vm398, %v400, %v396
    %v402 = vmul.f32 %v377, %v401
    %v403 = vmin.f32 %v402, 1.0
    %v404 = vmax.f32 %v403, -1.0
    %v405 = vmul.f32 %v364, %v364
    %v406 = vmin.f32 16.0, %v405
    %v407 = vmul.f32 %v406, 2.1237322e-06
    %v408 = vadd.f32 %v407, 0.00028619796
    %v409 = vmul.f32 %v406, %v408
    %v410 = vadd.f32 %v409, 0.0036580483
    %v411 = vmul.f32 %v406, %v410
    %v412 = vadd.f32 %v411, 0.05243302
    %v413 = vmul.f32 %v406, %v412
    %v414 = vadd.f32 %v413, 0.18741608
    %v415 = vmul.f32 %v406, %v414
    %v416 = vadd.f32 %v415, 1.1283791
    %v417 = vmul.f32 %v364, %v416
    %v418 = vmul.f32 %v406, 3.8918573e-05
    %v419 = vadd.f32 %v418, 0.001143296
    %v420 = vmul.f32 %v406, %v419
    %v421 = vadd.f32 %v420, 0.014752088
    %v422 = vmul.f32 %v406, %v421
    %v423 = vadd.f32 %v422, 0.112945676
    %v424 = vmul.f32 %v406, %v423
    %v425 = vadd.f32 %v424, 0.4994258
    %v426 = vmul.f32 %v406, %v425
    %v427 = vadd.f32 %v426, 1.0
    %v428 = vrcp.pop %v427
    %v429 = vmul.f32 %v427, %v428
    %v430 = vsub.f32 1.0, %v429
    %v431 = vmul.f32 %v428, %v430
    %v432 = vadd.f32 %v428, %v431
    %vm433 = vweird.f32 %v427
    %vm434 = vweird.f32 %v428
    %vm435 = vmor %vm433, %vm434
    %v436 = vsel %vm435, %v428, %v432
    %v437 = vand.u32 2147483647, %v427
    %vm438 = vcmp.eq.f32.partialorder %v437, 8.507059e+37
    %v439 = vand.u32 %v427, 2147483648
    %v440 = vor.u32 1.1754944e-38, %v439
    %v441 = vsel %vm438, %v440, %v436
    %v442 = vmul.f32 %v417, %v441
    %v443 = vmin.f32 %v442, 1.0
    %v444 = vmax.f32 %v443, -1.0
    %v445 = vadd.f32 %v404, 1.0
    %v446 = vadd.f32 %v444, 1.0
    %v447 = vmul.f32 %v361, %v445
    %v448 = vmul.f32 %v362, %v446
    %v449 = vld [vmem:[%s5] sm:$0xff]
    %450 = vmatpush.xpose.msra.mxu0 0.0
    %451 = vmatpush.xpose.msra.mxu0 0.0
    %452 = vmatpush.xpose.msra.mxu0 0.0
    %453 = vmatpush.xpose.msra.mxu0 0.0
    %454 = vmatpush.xpose.msra.mxu0 0.0
    %455 = vmatpush.xpose.msra.mxu0 0.0
    %456 = vmatpush.xpose.msra.mxu0 0.0
    %457 = vmatpush.xpose.msra.mxu0 0.0
    %458 = vmatpush.xpose.msra.mxu0 0.0
    %459 = vmatpush.xpose.msra.mxu0 0.0
    %460 = vmatpush.xpose.msra.mxu0 0.0
    %461 = vmatpush.xpose.msra.mxu0 0.0
    %462 = vmatpush.xpose.msra.mxu0 0.0
    %463 = vmatpush.xpose.msra.mxu0 0.0
    %464 = vmatpush.xpose.msra.mxu0 %v448
    %465 = vmatpush.xpose.msra.mxu0 %v447
    %466 = vmatmul.f32.gmra.mxu0 %v449
    %v467 = vpop.f32.mrf.mxu0
    %v468 = vadd.f32 0.0, %v467
    %469 = vdwg.mxu0
    %v470 = vld [vmem:[%s6] sm:$0xff]
    %v471 = vld [vmem:[%s6 + $0x8] sm:$0xff]
    %v472 = vld [vmem:[%s8] sm:$0xff]
    %vm473 = vcmask 130048
    %v475 = vsel %vm473, %v468, 0
    %477 = vmatpush.msra.mxu0 0.0
    %478 = vmatpush.msra.mxu0 0.0
    %479 = vmatpush.msra.mxu0 0.0
    %480 = vmatpush.msra.mxu0 0.0
    %481 = vmatpush.msra.mxu0 0.0
    %482 = vmatpush.msra.mxu0 0.0
    %483 = vmatpush.msra.mxu0 0.0
    %484 = vmatpush.msra.mxu0 0.0
    %485 = vmatpush.msra.mxu0 0.0
    %486 = vmatpush.msra.mxu0 0.0
    %487 = vmatpush.msra.mxu0 0.0
    %488 = vmatpush.msra.mxu0 0.0
    %489 = vmatpush.msra.mxu0 0.0
    %490 = vmatpush.msra.mxu0 0.0
    %491 = vmatpush.msra.mxu0 %v471
    %492 = vmatpush.msra.mxu0 %v470
    %493 = vmatmul.f32.gmra.mxu0 %v475
    %v494 = vpop.f32.mrf.mxu0
    %v495 = vadd.f32 %v472, %v494
    %496 = vdwg.mxu0
    %v497 = vld [vmem:[%s1] sm:$0xff]
    %v498 = vadd.f32 %v497, %v495
    %v499 = vsel %vm256, %v498, 0.0
    %500 = vadd.xlane.f32.xlu0 %v499
    %v501 = vpop.xlane.xlu0 %500
    %v502 = vrcp.pop 32.0
    %v503 = vmul.f32 32.0, %v502
    %v504 = vsub.f32 1.0, %v503
    %v505 = vmul.f32 %v502, %v504
    %v506 = vadd.f32 %v502, %v505
    %vm507 = vweird.f32 %v502
    %v508 = vsel %vm507, %v502, %v506
    %v509 = vmul.f32 %v501, %v508
    %v510 = vsub.f32 %v498, %v509
    %v511 = vmul.f32 %v510, %v510
    %v512 = vsel %vm256, %v511, 0.0
    %513 = vadd.xlane.f32.xlu0 %v512
    %v514 = vpop.xlane.xlu0 %513
    %v515 = vmul.f32 %v514, %v508
    %v516 = vadd.f32 %v515, 1e-05
    %v517 = vrsqrt.pop %v516
    %v518 = vmul.f32 %v517, %v516
    %v519 = vmul.f32 %v518, %v517
    %v520 = vmul.f32 0.5, %v519
    %v521 = vsub.f32 1.5, %v520
    %v522 = vmul.f32 %v517, %v521
    %vm523 = vweird.f32 %v516
    %vm524 = vweird.f32 %v517
    %vm525 = vmor %vm523, %vm524
    %v526 = vsel %vm525, %v517, %v522
    %v527 = vmul.f32 %v510, %v526
    %v528 = vperm.slane %v33, 2
    %v529 = vmul.f32 %v527, %v528
    %v530 = vperm.slane %v33, 3
    %v531 = vadd.f32 %v529, %v530
    %532 = vst.msk [vmem:[#allocation2] sm:$0xff] %vm256, %v531
    %s533 = scalar_lea.vmem %s1, 8
    %v534 = vld [vmem:[%s533] sm:$0xff]
    %536 = vrot.lane.b32.xlu0 %v495, 96
    %v537 = vpop.permute.xlu0 %536
    %v539 = vadd.f32 %v534, %v537
    %v540 = vsel %vm256, %v539, 0.0
    %541 = vadd.xlane.f32.xlu0 %v540
    %v542 = vpop.xlane.xlu0 %541
    %v543 = vmul.f32 %v542, %v508
    %v544 = vsub.f32 %v539, %v543
    %v545 = vmul.f32 %v544, %v544
    %v546 = vsel %vm256, %v545, 0.0
    %547 = vadd.xlane.f32.xlu0 %v546
    %v548 = vpop.xlane.xlu0 %547
    %v549 = vmul.f32 %v548, %v508
    %v550 = vadd.f32 %v549, 1e-05
    %v551 = vrsqrt.pop %v550
    %v552 = vmul.f32 %v551, %v550
    %v553 = vmul.f32 %v552, %v551
    %v554 = vmul.f32 0.5, %v553
    %v555 = vsub.f32 1.5, %v554
    %v556 = vmul.f32 %v551, %v555
    %vm557 = vweird.f32 %v550
    %vm558 = vweird.f32 %v551
    %vm559 = vmor %vm557, %vm558
    %v560 = vsel %vm559, %v551, %v556
    %v561 = vmul.f32 %v544, %v560
    %v562 = vmul.f32 %v561, %v528
    %v563 = vadd.f32 %v562, %v530
    %s564 = scalar_lea.vmem [#allocation2], 8
    %565 = vst.msk [vmem:[%s564] sm:$0xff] %vm256, %v563
    // Predicated region
    $region38: #{graph_block_rgcn_forward.1} parent=1 // pred_check
      _
    $region39: #{graph_block_rgcn_forward.1} parent=1 // pred_check_branch
      %567 = sbr.rel (0) target = $region41
    $region40: #{graph_block_rgcn_forward.1} parent=1 // pred_region
      %569 = vsyncadd [#allocation3], 0
      %s570 = sshll.u32 [#allocation2], 4
      %s571 = int_to_ptr.vmem [resolvable:$true] %s570
      %s572 = sshll.u32 %s9, 4
      %s573 = int_to_ptr.hbm [resolvable:$true] %s572
      %578 = dma.vmem_to_hbm [thread:$0]  %s571, 256, %s573, [#allocation3], 128, 128, 8
    $region41: #{graph_block_rgcn_forward.1} parent=1 // pred_fallthru
      _
    // Predicated region
    $region42: #{graph_block_rgcn_forward.1} parent=1 // pred_check
      _
    $region43: #{graph_block_rgcn_forward.1} parent=1 // pred_check_branch
      %580 = sbr.rel (0) target = $region45
    $region44: #{graph_block_rgcn_forward.1} parent=1 // pred_region
      %582 = dma.done [#allocation3], 256
    $region45: #{graph_block_rgcn_forward.1} parent=1 // pred_fallthru
      _
    %583 = vsyncpa [#allocation3], 1

</llo_original>
